<compile_context>
chip_gen: v6e
topology: v6e:2x2x1
jax: 0.10.0
libtpu: 0.0.40
codegen_flags: <defaults>
</compile_context>

<pallas_src>
import math

import jax
import jax.numpy as jnp
from jax.experimental import pallas as pl
from jax.experimental.pallas import tpu as pltpu

_VMEM_BUDGET = 24 * 1024 * 1024   # working-set target; fits v5e/v6e/v7x
_VMEM_LIMIT = 32 * 1024 * 1024    # explicit scoped-VMEM limit for the kernel


def _round_up(x, m):
    return ((x + m - 1) // m) * m


def _attr_emb_kernel(fvec_ref, attr_ref, wdf_ref, wfk_ref, out_ref):
    # af = attr @ w_df            [TB, Fp]  (MXU, bf16 operands, f32 accumulate)
    af = jnp.dot(attr_ref[...], wdf_ref[...], preferred_element_type=jnp.float32)
    # z = factor_vec * af         [TB, Fp]  (VPU, f32)
    z = fvec_ref[...].astype(jnp.float32) * af
    # emb = z @ w_fk              [TB, Ep]  (MXU, f32 accumulate, no transpose)
    out_ref[...] = jnp.dot(z.astype(wfk_ref.dtype), wfk_ref[...],
                           preferred_element_type=jnp.float32).astype(out_ref.dtype)


def _plain_emb_kernel(fvec_ref, wfk_ref, out_ref):
    out_ref[...] = jnp.dot(fvec_ref[...], wfk_ref[...],
                           preferred_element_type=jnp.float32).astype(out_ref.dtype)


def attributed_embedding(ids, attr_vec, w_vf, w_df, w_fk, *, block_b=1024,
                         mxu_dtype=jnp.bfloat16, out_dtype=jnp.float32):
    """Forward pass matching PyTorch AttributedEmbedding.forward."""
    V, F = w_vf.shape
    Fk, E = w_fk.shape
    assert Fk == F
    B = ids.shape[0]

    Fp = _round_up(F, 128)               # lane-dense factor dim
    Ep = _round_up(E, 128)               # lane-dense output dim
    eb = jnp.dtype(mxu_dtype).itemsize
    ob = jnp.dtype(out_dtype).itemsize

    has_attr = attr_vec is not None
    A = attr_vec.shape[1] if has_attr else 0
    Ap = _round_up(max(A, 1), 8) if has_attr else 0   # sublane pad only, NOT 128

    # ---- batch tiling: big tiles, >=2 of them (v7x megacore), VMEM-budgeted.
    # Double-buffered per-row bytes + double-buffered resident weight blocks.
    per_row = 2 * (Fp * eb + Ep * ob + (Ap * eb if has_attr else 0))
    resident = 2 * Fp * Ep * eb + (2 * Ap * Fp * eb if has_attr else 0)
    tb_budget = max(8, ((_VMEM_BUDGET - resident) // max(per_row, 1)) // 8 * 8)

    n_tiles = max(2, pl.cdiv(B, block_b))                 # >=2 -> both v7x TCs busy
    TB = max(8, min(_round_up(pl.cdiv(B, n_tiles), 8), block_b, tb_budget))
    n_tiles = pl.cdiv(B, TB)                              # re-derive (minimal padding)
    Bp = n_tiles * TB

    # ---- embedding lookup: gather FIRST at original dtype, then cast/pad the
    # [Bp, F] result only (O(B*F), not O(V*F)).  ids are padded so the gather
    # lands directly in the padded batch shape.
    ids_p = jnp.pad(ids.astype(jnp.int32), (0, Bp - B))
    fvec = jnp.take(w_vf, ids_p, axis=0).astype(mxu_dtype)        # [Bp, F]
    fvec = jnp.pad(fvec, ((0, 0), (0, Fp - F)))                   # [Bp, Fp]
    # TODO(synk): when V*Fp fits the VMEM budget, fuse this gather into the
    # kernel (scalar-prefetched ids + resident w_vf block) to drop the fvec
    # HBM round trip; kept as XLA glue here pending a robust Mosaic row-gather.

    w_fk_p = jnp.pad(w_fk.astype(mxu_dtype), ((0, Fp - F), (0, Ep - E)))

    cparams = pltpu.CompilerParams(
        dimension_semantics=("parallel",),
        vmem_limit_bytes=_VMEM_LIMIT,
    )
    grid = (n_tiles,)

    if has_attr:
        attr_p = jnp.pad(attr_vec.astype(mxu_dtype), ((0, Bp - B), (0, Ap - A)))
        w_df_p = jnp.pad(w_df.astype(mxu_dtype), ((0, Ap - A), (0, Fp - F)))

        cost = pl.CostEstimate(
            flops=2 * Bp * Ap * Fp + Bp * Fp + 2 * Bp * Fp * Ep,
            transcendentals=0,
            bytes_accessed=(Bp * Fp + Bp * Ap + Ap * Fp + Fp * Ep) * eb + Bp * Ep * ob,
        )
        out_p = pl.pallas_call(
            _attr_emb_kernel,
            out_shape=jax.ShapeDtypeStruct((Bp, Ep), out_dtype),
            grid=grid,
            in_specs=[
                pl.BlockSpec((TB, Fp), lambda i: (i, 0)),   # factor_vec tile
                pl.BlockSpec((TB, Ap), lambda i: (i, 0)),   # attr tile
                pl.BlockSpec((Ap, Fp), lambda i: (0, 0)),   # w_df resident
                pl.BlockSpec((Fp, Ep), lambda i: (0, 0)),   # w_fk resident
            ],
            out_specs=pl.BlockSpec((TB, Ep), lambda i: (i, 0)),
            compiler_params=cparams,
            cost_estimate=cost,
        )(fvec, attr_p, w_df_p, w_fk_p)
    else:
        cost = pl.CostEstimate(
            flops=2 * Bp * Fp * Ep,
            transcendentals=0,
            bytes_accessed=(Bp * Fp + Fp * Ep) * eb + Bp * Ep * ob,
        )
        out_p = pl.pallas_call(
            _plain_emb_kernel,
            out_shape=jax.ShapeDtypeStruct((Bp, Ep), out_dtype),
            grid=grid,
            in_specs=[
                pl.BlockSpec((TB, Fp), lambda i: (i, 0)),   # factor_vec tile
                pl.BlockSpec((Fp, Ep), lambda i: (0, 0)),   # w_fk resident
            ],
            out_specs=pl.BlockSpec((TB, Ep), lambda i: (i, 0)),
            compiler_params=cparams,
            cost_estimate=cost,
        )(fvec, w_fk_p)

    return out_p[:B, :E]


def _xavier_uniform(key, shape):
    fan_in, fan_out = shape
    bound = math.sqrt(6.0 / (fan_in + fan_out))
    return jax.random.uniform(key, shape, jnp.float32, -bound, bound)


if __name__ == "__main__":
    # Small deterministic shapes consistent with the module.
    vocab_size = 64
    embedding_dim = 128
    n_factors = 128
    n_attrs = 16
    batch_size = 16

    key = jax.random.PRNGKey(0)
    k_vf, k_df, k_fk, k_ids, k_attr = jax.random.split(key, 5)

    # Parameters (xavier_uniform, deterministic).
    w_vf = _xavier_uniform(k_vf, (vocab_size, n_factors))
    w_df = _xavier_uniform(k_df, (n_attrs, n_factors))
    w_fk = _xavier_uniform(k_fk, (n_factors, embedding_dim))

    # Inputs.
    ids = jax.random.randint(k_ids, (batch_size,), 0, vocab_size)
    attr_vec = jax.random.normal(k_attr, (batch_size, n_attrs), jnp.float32)

    fwd = jax.jit(attributed_embedding,
                  static_argnames=("block_b", "mxu_dtype", "out_dtype"))

    # Pure-JAX f32 reference.
    factor_vec = w_vf[ids]
    ref = (factor_vec * (attr_vec @ w_df)) @ w_fk
    ref_plain = factor_vec @ w_fk

    # Default path: bf16 MXU operands, f32 accumulation / output.
    emb = fwd(ids, attr_vec, w_vf, w_df, w_fk)
    emb_plain = fwd(ids, None, w_vf, w_df, w_fk)
    jax.block_until_ready((emb, emb_plain))
    assert emb.shape == (batch_size, embedding_dim)
    assert emb_plain.shape == (batch_size, embedding_dim)
    assert jnp.allclose(emb, ref, atol=2e-2, rtol=2e-2)
    assert jnp.allclose(emb_plain, ref_plain, atol=2e-2, rtol=2e-2)

    # Exact path (f32 MXU operands) for a tight numeric check.
    emb_f32 = fwd(ids, attr_vec, w_vf, w_df, w_fk, mxu_dtype=jnp.float32)
    jax.block_until_ready(emb_f32)
    assert jnp.allclose(emb_f32, ref, atol=1e-4, rtol=1e-4)

    print("KERNEL_OK")
</pallas_src>

<mosaic_0001>
module attributes {stable_mosaic.version = 11 : i64} {
  func.func @_attr_emb_kernel(%arg0: i32, %arg1: memref<8x128xbf16, #tpu.memory_space<vmem>>, %arg2: memref<8x16xbf16, #tpu.memory_space<vmem>>, %arg3: memref<16x128xbf16, #tpu.memory_space<vmem>>, %arg4: memref<128x128xbf16, #tpu.memory_space<vmem>>, %arg5: memref<8x128xf32, #tpu.memory_space<vmem>>) attributes {dimension_semantics = [#tpu.dimension_semantics<parallel>], iteration_bounds = array<i64: 2>, scalar_prefetch = 0 : i64, scratch_operands = 0 : i64, tpu.core_type = #tpu.core_type<tc>, window_params = [{transform_indices = @transform_0, window_bounds = array<i64: 8, 128>}, {transform_indices = @transform_1, window_bounds = array<i64: 8, 16>}, {pipeline_mode = #tpu.pipeline_mode<synchronous>, transform_indices = @transform_2, window_bounds = array<i64: 16, 128>}, {pipeline_mode = #tpu.pipeline_mode<synchronous>, transform_indices = @transform_3, window_bounds = array<i64: 128, 128>}, {transform_indices = @transform_4, window_bounds = array<i64: 8, 128>}]} {
    %c0 = arith.constant 0 : index
    %c0_0 = arith.constant 0 : index
    %0 = vector.load %arg2[%c0, %c0_0] : memref<8x16xbf16, #tpu.memory_space<vmem>>, vector<8x16xbf16>
    %c0_1 = arith.constant 0 : index
    %c0_2 = arith.constant 0 : index
    %1 = vector.load %arg3[%c0_1, %c0_2] : memref<16x128xbf16, #tpu.memory_space<vmem>>, vector<16x128xbf16>
    %cst = arith.constant dense<0.000000e+00> : vector<8x128xf32>
    %2 = tpu.matmul %0, %1, %cst {dimension_numbers = #tpu.dot_dimension_numbers<[1], [0], [0], [1], [0, 0, 1, 1], [], []>} : vector<8x16xbf16>, vector<16x128xbf16>, vector<8x128xf32> -> vector<8x128xf32>
    %c0_3 = arith.constant 0 : index
    %c0_4 = arith.constant 0 : index
    %3 = vector.load %arg1[%c0_3, %c0_4] : memref<8x128xbf16, #tpu.memory_space<vmem>>, vector<8x128xbf16>
    %4 = arith.extf %3 : vector<8x128xbf16> to vector<8x128xf32>
    %5 = arith.mulf %4, %2 : vector<8x128xf32>
    %6 = arith.truncf %5 : vector<8x128xf32> to vector<8x128xbf16>
    %c0_5 = arith.constant 0 : index
    %c0_6 = arith.constant 0 : index
    %7 = vector.load %arg4[%c0_5, %c0_6] : memref<128x128xbf16, #tpu.memory_space<vmem>>, vector<128x128xbf16>
    %cst_7 = arith.constant dense<0.000000e+00> : vector<8x128xf32>
    %8 = tpu.matmul %6, %7, %cst_7 {dimension_numbers = #tpu.dot_dimension_numbers<[1], [0], [0], [1], [0, 0, 1, 1], [], []>} : vector<8x128xbf16>, vector<128x128xbf16>, vector<8x128xf32> -> vector<8x128xf32>
    %c0_8 = arith.constant 0 : index
    %c0_9 = arith.constant 0 : index
    %9 = vector.load %arg5[%c0_8, %c0_9] : memref<8x128xf32, #tpu.memory_space<vmem>>, vector<8x128xf32>
    tpu.vector_store %arg5[%c0_8, %c0_9], %8 {strides = array<i32>} : memref<8x128xf32, #tpu.memory_space<vmem>>, vector<8x128xf32>,
    return
  }
  func.func @transform_0(%arg0: i32) -> (i32, i32) {
    %c0_i32 = arith.constant 0 : i32
    %c0_i32_0 = arith.constant 0 : i32
    return %arg0, %c0_i32 : i32, i32
  }
  func.func @transform_1(%arg0: i32) -> (i32, i32) {
    %c0_i32 = arith.constant 0 : i32
    %c0_i32_0 = arith.constant 0 : i32
    return %arg0, %c0_i32 : i32, i32
  }
  func.func @transform_2(%arg0: i32) -> (i32, i32) {
    %c0_i32 = arith.constant 0 : i32
    %c0_i32_0 = arith.constant 0 : i32
    %c0_i32_1 = arith.constant 0 : i32
    return %c0_i32, %c0_i32_0 : i32, i32
  }
  func.func @transform_3(%arg0: i32) -> (i32, i32) {
    %c0_i32 = arith.constant 0 : i32
    %c0_i32_0 = arith.constant 0 : i32
    %c0_i32_1 = arith.constant 0 : i32
    return %c0_i32, %c0_i32_0 : i32, i32
  }
  func.func @transform_4(%arg0: i32) -> (i32, i32) {
    %c0_i32 = arith.constant 0 : i32
    %c0_i32_0 = arith.constant 0 : i32
    return %arg0, %c0_i32 : i32, i32
  }
}

</mosaic_0001>

<llo_original>
// kernel: attributed_embedding.1
$region0: #{attributed_embedding.1}
  #allocation0 [shape = 'u32[]', space=smem, size = 0x4, offset = 0x4, fixed_abs, tag = 'smem constant byte address 0x4 - core index']
  #allocation1 [shape = 'u32[144,128]{1,0:T(1,128)}', space=vmem, size = 0x12000, scoped, tag = 'internal scratch']
  %s0 = inlined_call_operand.vmem [shape: bf16[16,128], index: 0, kind: input, shape index: {}]
  %s1 = inlined_call_operand.vmem [shape: bf16[16,16], index: 1, kind: input, shape index: {}]
  %s2 = inlined_call_operand.vmem [shape: bf16[16,128], index: 2, kind: input, shape index: {}]
  %s3 = inlined_call_operand.vmem [shape: bf16[128,128], index: 3, kind: input, shape index: {}]
  %s4 = inlined_call_operand.hbm [shape: f32[16,128], index: 4, kind: output, shape index: {}]
  %s5 = sld [smem:[#allocation0]]
  $region49: #{attributed_embedding.1} parent=0
    _
  %s7 = ssub.s32 1, %s5
  %s8 = scalar_select 0, %s7, %s5
  $region1: #{attributed_embedding.1} parent=0
    #allocation2 [shape = 'u8[8192]{0}', space=vmem, size = 0x2000, scoped, tag = 'output window, operand 0']
    #allocation3 [shape = 's32[2]{0}', space=sflag, size = 0x8, scoped, tag = 'scoped memory for attributed_embedding.1']
    %9 = vsyncpa [#allocation3], 0
    %s10 = scalar_lea.sflag [#allocation3], 1
    %11 = vsyncpa %s10, 0
    loop: start=0, step=1, limit=4
    $region2: #{attributed_embedding.1} parent=1 // loop_pre_header
      _
    $region3: #{attributed_embedding.1} parent=1 // loop_header
      %s13 = sphi 0, %s17
      %p14 = scmp.ge.s32.totalorder %s13, 4
      %s23 = sphi 0, %s25
      %s26 = sphi 0, %s23
      %s27 = sphi 0, %s26
      %s43 = sphi 0, %s27
      %s49 = sphi 0, %s51
      %s52 = sphi 0, %s49
      %s53 = sphi 0, %s52
      %s69 = sphi 0, %s53
      %s73 = sphi 0, %s73
      %s75 = sphi 0, %s73
      %s76 = sphi 0, %s75
      %s90 = sphi 0, %s76
      %s94 = sphi 0, %s94
      %s96 = sphi 0, %s94
      %s97 = sphi 0, %s96
      %s111 = sphi 0, %s97
      %s117 = sphi 0, %s119
      %s120 = sphi 0, %s117
      %s121 = sphi 0, %s120
      %s137 = sphi 0, %s121
    $region4: #{attributed_embedding.1} parent=1 // loop_header_branch
      %16 = sbr.rel (%p14) target = $region8
    $region5: #{attributed_embedding.1} parent=1 // loop_body
      %s18 = ssub.s32 %s13, 1
      %s19 = ssub.s32 %s13, 2
      %s20 = sadd.s32 %s13, 1
      %s21 = ssub.s32 %s13, %s20
      %p22 = scmp.eq.s32.totalorder %s21, 0
      %s24 = sadd.s32 %s23, 1
      %s25 = scalar_select %p22, %s23, %s24
      %p28 = pneg %p22
      %p29 = scmp.eq.s32.totalorder %s13, 1
      %p30 = por %p28, %p29
      %p31 = scmp.ne.s32.totalorder %s23, %s26
      %p32 = scmp.eq.s32.totalorder %s13, 0
      %p33 = por %p31, %p32
      %p34 = scmp.ne.s32.totalorder %s23, %s26
      %p35 = scmp.eq.s32.totalorder %s18, 1
      %p36 = por %p34, %p35
      %p37 = scmp.ne.s32.totalorder %s26, %s27
      %p38 = scmp.eq.s32.totalorder %s18, 0
      %p39 = por %p37, %p38
      %p40 = scmp.ne.s32.totalorder %s26, %s27
      %p41 = scmp.eq.s32.totalorder %s19, 1
      %p42 = por %p40, %p41
      %p44 = scmp.ne.s32.totalorder %s27, %s43
      %p45 = scmp.eq.s32.totalorder %s19, 0
      %p46 = por %p44, %p45
      %s47 = ssub.s32 %s13, %s20
      %p48 = scmp.eq.s32.totalorder %s47, 0
      %s50 = sadd.s32 %s49, 1
      %s51 = scalar_select %p48, %s49, %s50
      %p54 = pneg %p48
      %p55 = scmp.eq.s32.totalorder %s13, 1
      %p56 = por %p54, %p55
      %p57 = scmp.ne.s32.totalorder %s49, %s52
      %p58 = scmp.eq.s32.totalorder %s13, 0
      %p59 = por %p57, %p58
      %p60 = scmp.ne.s32.totalorder %s49, %s52
      %p61 = scmp.eq.s32.totalorder %s18, 1
      %p62 = por %p60, %p61
      %p63 = scmp.ne.s32.totalorder %s52, %s53
      %p64 = scmp.eq.s32.totalorder %s18, 0
      %p65 = por %p63, %p64
      %p66 = scmp.ne.s32.totalorder %s52, %s53
      %p67 = scmp.eq.s32.totalorder %s19, 1
      %p68 = por %p66, %p67
      %p70 = scmp.ne.s32.totalorder %s53, %s69
      %p71 = scmp.eq.s32.totalorder %s19, 0
      %p72 = por %p70, %p71
      %s74 = sadd.s32 %s73, 1
      %p77 = scmp.eq.s32.totalorder %s13, 1
      %p78 = scmp.ne.s32.totalorder %s73, %s75
      %p79 = scmp.eq.s32.totalorder %s13, 0
      %p80 = por %p78, %p79
      %p81 = scmp.ne.s32.totalorder %s73, %s75
      %p82 = scmp.eq.s32.totalorder %s18, 1
      %p83 = por %p81, %p82
      %p84 = scmp.ne.s32.totalorder %s75, %s76
      %p85 = scmp.eq.s32.totalorder %s18, 0
      %p86 = por %p84, %p85
      %p87 = scmp.ne.s32.totalorder %s75, %s76
      %p88 = scmp.eq.s32.totalorder %s19, 1
      %p89 = por %p87, %p88
      %p91 = scmp.ne.s32.totalorder %s76, %s90
      %p92 = scmp.eq.s32.totalorder %s19, 0
      %p93 = por %p91, %p92
      %s95 = sadd.s32 %s94, 1
      %p98 = scmp.eq.s32.totalorder %s13, 1
      %p99 = scmp.ne.s32.totalorder %s94, %s96
      %p100 = scmp.eq.s32.totalorder %s13, 0
      %p101 = por %p99, %p100
      %p102 = scmp.ne.s32.totalorder %s94, %s96
      %p103 = scmp.eq.s32.totalorder %s18, 1
      %p104 = por %p102, %p103
      %p105 = scmp.ne.s32.totalorder %s96, %s97
      %p106 = scmp.eq.s32.totalorder %s18, 0
      %p107 = por %p105, %p106
      %p108 = scmp.ne.s32.totalorder %s96, %s97
      %p109 = scmp.eq.s32.totalorder %s19, 1
      %p110 = por %p108, %p109
      %p112 = scmp.ne.s32.totalorder %s97, %s111
      %p113 = scmp.eq.s32.totalorder %s19, 0
      %p114 = por %p112, %p113
      %s115 = ssub.s32 %s13, %s20
      %p116 = scmp.eq.s32.totalorder %s115, 0
      %s118 = sadd.s32 %s117, 1
      %s119 = scalar_select %p116, %s117, %s118
      %p122 = pneg %p116
      %p123 = scmp.eq.s32.totalorder %s13, 1
      %p124 = por %p122, %p123
      %p125 = scmp.ne.s32.totalorder %s117, %s120
      %p126 = scmp.eq.s32.totalorder %s13, 0
      %p127 = por %p125, %p126
      %p128 = scmp.ne.s32.totalorder %s117, %s120
      %p129 = scmp.eq.s32.totalorder %s18, 1
      %p130 = por %p128, %p129
      %p131 = scmp.ne.s32.totalorder %s120, %s121
      %p132 = scmp.eq.s32.totalorder %s18, 0
      %p133 = por %p131, %p132
      %p134 = scmp.ne.s32.totalorder %s120, %s121
      %p135 = scmp.eq.s32.totalorder %s19, 1
      %p136 = por %p134, %p135
      %p138 = scmp.ne.s32.totalorder %s121, %s137
      %p139 = scmp.eq.s32.totalorder %s19, 0
      %p140 = por %p138, %p139
      %p141 = scmp.le.s32.totalorder 1, %s13
      %p142 = scmp.lt.s32.totalorder %s13, 3
      %p143 = pnand %p141, %p142
      %p144 = pneg %p143
      // Predicated region
      $region9: #{attributed_embedding.1} parent=5 // pred_check
        _
      $region10: #{attributed_embedding.1} parent=5 // pred_check_branch
        %146 = sbr.rel (%p143) target = $region12
      $region11: #{attributed_embedding.1} parent=5 // pred_region
        %s147 = ssub.s32 %s13, 1
        // Predicated region
        $region13: #{attributed_embedding.1} parent=11 // pred_check
          %p148 = pneg %p86
        $region14: #{attributed_embedding.1} parent=11 // pred_check_branch
          %150 = sbr.rel (%p148) target = $region16
        $region15: #{attributed_embedding.1} parent=11 // pred_region
          _
        $region16: #{attributed_embedding.1} parent=11 // pred_fallthru
          _
        // Predicated region
        $region17: #{attributed_embedding.1} parent=11 // pred_check
          %p151 = pneg %p107
        $region18: #{attributed_embedding.1} parent=11 // pred_check_branch
          %153 = sbr.rel (%p151) target = $region20
        $region19: #{attributed_embedding.1} parent=11 // pred_region
          _
        $region20: #{attributed_embedding.1} parent=11 // pred_fallthru
          _
      $region12: #{attributed_embedding.1} parent=5 // pred_fallthru
        _
      %p154 = scmp.lt.s32.totalorder %s13, 2
      // Predicated region
      $region21: #{attributed_embedding.1} parent=5 // pred_check
        %p155 = pneg %p154
      $region22: #{attributed_embedding.1} parent=5 // pred_check_branch
        %157 = sbr.rel (%p155) target = $region24
      $region23: #{attributed_embedding.1} parent=5 // pred_region
        // Predicated region
        $region25: #{attributed_embedding.1} parent=23 // pred_check
          %p158 = pneg %p33
        $region26: #{attributed_embedding.1} parent=23 // pred_check_branch
          %160 = sbr.rel (%p158) target = $region28
        $region27: #{attributed_embedding.1} parent=23 // pred_region
          %p161 = scmp.lt.s32.totalorder %s13, 1
          %s162 = scalar_select %p161, %s13, 1
          %s163 = smul.addr %s162, 4
          %s164 = scalar_lea.vmem %s0, %s163
        $region28: #{attributed_embedding.1} parent=23 // pred_fallthru
          _
        // Predicated region
        $region29: #{attributed_embedding.1} parent=23 // pred_check
          %p165 = pneg %p59
        $region30: #{attributed_embedding.1} parent=23 // pred_check_branch
          %167 = sbr.rel (%p165) target = $region32
        $region31: #{attributed_embedding.1} parent=23 // pred_region
          %p168 = scmp.lt.s32.totalorder %s13, 1
          %s169 = scalar_select %p168, %s13, 1
          %s170 = smul.addr %s169, 4
          %s171 = scalar_lea.vmem %s1, %s170
        $region32: #{attributed_embedding.1} parent=23 // pred_fallthru
          _
      $region24: #{attributed_embedding.1} parent=5 // pred_fallthru
        _
      %p172 = scmp.le.s32.totalorder 1, %s13
      %p173 = scmp.lt.s32.totalorder %s13, 3
      %p174 = pnand %p172, %p173
      %p175 = pneg %p174
      // Predicated region
      $region33: #{attributed_embedding.1} parent=5 // pred_check
        _
      $region34: #{attributed_embedding.1} parent=5 // pred_check_branch
        %177 = sbr.rel (%p174) target = $region36
      $region35: #{attributed_embedding.1} parent=5 // pred_region
        %s178 = ssub.s32 %s13, 1
        %p179 = scmp.lt.s32.totalorder %s18, 1
        %s180 = scalar_select %p179, %s18, 1
        %s181 = smul.addr %s180, 4
        %s182 = scalar_lea.vmem %s0, %s181
        %p183 = pneg %p39
        %p184 = pneg %p36
        %p185 = scmp.lt.s32.totalorder %s18, 1
        %s186 = scalar_select %p185, %s18, 1
        %s187 = smul.addr %s186, 4
        %s188 = scalar_lea.vmem %s1, %s187
        %p189 = pneg %p65
        %p190 = pneg %p62
        %p191 = pneg %p86
        %p192 = pneg %p83
        %p193 = pneg %p107
        %p194 = pneg %p104
        %p195 = pneg %p133
        %p196 = pneg %p130
        %s197 = sand.u32 %s120, 1
        %s198 = scalar_lea.sflag [#allocation3], %s197
        %s199 = sand.u32 %s120, 1
        %s200 = smul.addr %s199, 8
        %s201 = scalar_lea.vmem [#allocation2], %s200
        %p202 = scmp.lt.s32.totalorder %s18, 1
        %s203 = scalar_select %p202, %s18, 1
        %s204 = smul.addr %s203, 4
        %s205 = scalar_lea.vmem %s0, %s204
        %p206 = scmp.lt.s32.totalorder %s18, 1
        %s207 = scalar_select %p206, %s18, 1
        %s208 = smul.addr %s207, 4
        %s209 = scalar_lea.vmem %s1, %s208
        %v211 = vld [vmem:[%s209] sm:$0xf]
        %v212 = vld [vmem:[%s2] sm:$0xf]
        %v213 = vld [vmem:[%s2 + $0x4] sm:$0xf]
        %v216 = vunpack.c.l.b16 %v212
        %v217 = vunpack.c.l.b16 %v213
        %v218 = vpack.c.b16 %v217, %v216
        %vm220 = vcmask 130048
        %v222 = vsel %vm220, %v211, 0
        %224 = vmatprep.subr.bf16.mxu0 0
        %225 = vmatpush1.bf16.msra.mxu0 0
        %226 = vmatprep.subr.bf16.mxu0 0
        %227 = vmatpush1.bf16.msra.mxu0 0
        %228 = vmatprep.subr.bf16.mxu0 0
        %229 = vmatpush1.bf16.msra.mxu0 0
        %230 = vmatprep.subr.bf16.mxu0 0
        %231 = vmatpush1.bf16.msra.mxu0 0
        %232 = vmatprep.subr.bf16.mxu0 0
        %233 = vmatpush1.bf16.msra.mxu0 0
        %234 = vmatprep.subr.bf16.mxu0 0
        %235 = vmatpush1.bf16.msra.mxu0 0
        %236 = vmatprep.subr.bf16.mxu0 0
        %237 = vmatpush1.bf16.msra.mxu0 0
        %238 = vmatprep.subr.bf16.mxu0 0
        %239 = vmatpush1.bf16.msra.mxu0 %v218
        %240 = vmatprep.subr.bf16.mxu0 0
        %241 = vmatpush2.bf16.msra.mxu0 0
        %242 = vmatprep.subr.bf16.mxu0 0
        %243 = vmatpush2.bf16.msra.mxu0 0
        %244 = vmatprep.subr.bf16.mxu0 0
        %245 = vmatpush2.bf16.msra.mxu0 0
        %246 = vmatprep.subr.bf16.mxu0 0
        %247 = vmatpush2.bf16.msra.mxu0 0
        %248 = vmatprep.subr.bf16.mxu0 0
        %249 = vmatpush2.bf16.msra.mxu0 0
        %250 = vmatprep.subr.bf16.mxu0 0
        %251 = vmatpush2.bf16.msra.mxu0 0
        %252 = vmatprep.subr.bf16.mxu0 0
        %253 = vmatpush2.bf16.msra.mxu0 0
        %254 = vmatprep.subr.bf16.mxu0 0
        %255 = vmatpush2.bf16.msra.mxu0 0
        %256 = vmatprep.mubr.bf16.mxu0 0
        %257 = vmatmul.mubr.bf16.gmra.mxu0 %v222
        %v258 = vpop.f32.mrf.mxu0
        %v259 = vadd.f32 0.0, %v258
        %v260 = vpop.f32.mrf.mxu0
        %v261 = vpop.f32.mrf.mxu0
        %v262 = vpop.f32.mrf.mxu0
        %263 = vdwg.mxu0
        %v264 = vld [vmem:[%s205] sm:$0xf]
        %v265 = vunpack.c.l.bf16 %v264
        %v266 = vmul.f32 %v265, %v259
        %v267 = vpack.c.bf16 %v266, %v266
        %v268 = vld [vmem:[%s3] sm:$0xf]
        %v269 = vld [vmem:[%s3 + $0x4] sm:$0xf]
        %v270 = vld [vmem:[%s3 + $0x8] sm:$0xf]
        %v271 = vld [vmem:[%s3 + $0xc] sm:$0xf]
        %v272 = vld [vmem:[%s3 + $0x10] sm:$0xf]
        %v273 = vld [vmem:[%s3 + $0x14] sm:$0xf]
        %v274 = vld [vmem:[%s3 + $0x18] sm:$0xf]
        %v275 = vld [vmem:[%s3 + $0x1c] sm:$0xf]
        %v276 = vld [vmem:[%s3 + $0x20] sm:$0xf]
        %v277 = vld [vmem:[%s3 + $0x24] sm:$0xf]
        %v278 = vld [vmem:[%s3 + $0x28] sm:$0xf]
        %v279 = vld [vmem:[%s3 + $0x2c] sm:$0xf]
        %v280 = vld [vmem:[%s3 + $0x30] sm:$0xf]
        %v281 = vld [vmem:[%s3 + $0x34] sm:$0xf]
        %v282 = vld [vmem:[%s3 + $0x38] sm:$0xf]
        %v283 = vld [vmem:[%s3 + $0x3c] sm:$0xf]
        %v300 = vunpack.c.l.b16 %v268
        %v301 = vunpack.c.l.b16 %v269
        %v302 = vunpack.c.l.b16 %v270
        %v303 = vunpack.c.l.b16 %v271
        %v304 = vunpack.c.l.b16 %v272
        %v305 = vunpack.c.l.b16 %v273
        %v306 = vunpack.c.l.b16 %v274
        %v307 = vunpack.c.l.b16 %v275
        %v308 = vunpack.c.l.b16 %v276
        %v309 = vunpack.c.l.b16 %v277
        %v310 = vunpack.c.l.b16 %v278
        %v311 = vunpack.c.l.b16 %v279
        %v312 = vunpack.c.l.b16 %v280
        %v313 = vunpack.c.l.b16 %v281
        %v314 = vunpack.c.l.b16 %v282
        %v315 = vunpack.c.l.b16 %v283
        %v316 = vpack.c.b16 %v301, %v300
        %v317 = vpack.c.b16 %v303, %v302
        %v318 = vpack.c.b16 %v305, %v304
        %v319 = vpack.c.b16 %v307, %v306
        %v320 = vpack.c.b16 %v309, %v308
        %v321 = vpack.c.b16 %v311, %v310
        %v322 = vpack.c.b16 %v313, %v312
        %v323 = vpack.c.b16 %v315, %v314
        %332 = vmatprep.subr.bf16.mxu0 0
        %333 = vmatpush1.bf16.msra.mxu0 %v323
        %334 = vmatprep.subr.bf16.mxu0 0
        %335 = vmatpush1.bf16.msra.mxu0 %v322
        %336 = vmatprep.subr.bf16.mxu0 0
        %337 = vmatpush1.bf16.msra.mxu0 %v321
        %338 = vmatprep.subr.bf16.mxu0 0
        %339 = vmatpush1.bf16.msra.mxu0 %v320
        %340 = vmatprep.subr.bf16.mxu0 0
        %341 = vmatpush1.bf16.msra.mxu0 %v319
        %342 = vmatprep.subr.bf16.mxu0 0
        %343 = vmatpush1.bf16.msra.mxu0 %v318
        %344 = vmatprep.subr.bf16.mxu0 0
        %345 = vmatpush1.bf16.msra.mxu0 %v317
        %346 = vmatprep.subr.bf16.mxu0 0
        %347 = vmatpush1.bf16.msra.mxu0 %v316
        %348 = vmatprep.subr.bf16.mxu0 0
        %349 = vmatpush2.bf16.msra.mxu0 0
        %350 = vmatprep.subr.bf16.mxu0 0
        %351 = vmatpush2.bf16.msra.mxu0 0
        %352 = vmatprep.subr.bf16.mxu0 0
        %353 = vmatpush2.bf16.msra.mxu0 0
        %354 = vmatprep.subr.bf16.mxu0 0
        %355 = vmatpush2.bf16.msra.mxu0 0
        %356 = vmatprep.subr.bf16.mxu0 0
        %357 = vmatpush2.bf16.msra.mxu0 0
        %358 = vmatprep.subr.bf16.mxu0 0
        %359 = vmatpush2.bf16.msra.mxu0 0
        %360 = vmatprep.subr.bf16.mxu0 0
        %361 = vmatpush2.bf16.msra.mxu0 0
        %362 = vmatprep.subr.bf16.mxu0 0
        %363 = vmatpush2.bf16.msra.mxu0 0
        %364 = vmatprep.mubr.bf16.mxu0 0
        %365 = vmatmul.mubr.bf16.gmra.mxu0 %v267
        %v366 = vpop.f32.mrf.mxu0
        %v367 = vadd.f32 0.0, %v366
        %v368 = vpop.f32.mrf.mxu0
        %v369 = vpop.f32.mrf.mxu0
        %v370 = vpop.f32.mrf.mxu0
        %371 = vdwg.mxu0
        %372 = vst [vmem:[%s201] sm:$0xff] %v367
        %s373 = sand.u32 %s120, 1
        %s374 = scalar_lea.sflag [#allocation3], %s373
        %s375 = sand.u32 %s120, 1
        %s376 = smul.addr %s375, 8
        %s377 = scalar_lea.vmem [#allocation2], %s376
        // Predicated region
        $region37: #{attributed_embedding.1} parent=35 // pred_check
          %p378 = pneg %p130
        $region38: #{attributed_embedding.1} parent=35 // pred_check_branch
          %380 = sbr.rel (%p378) target = $region40
        $region39: #{attributed_embedding.1} parent=35 // pred_region
          %s382 = ssub.s32 128, 128
          %383 = vsyncadd %s374, %s382
          %s384 = smul.addr %s18, 128
          %s385 = scalar_lea.hbm %s4, %s384
          %s387 = sshll.u32 %s377, 4
          %s388 = int_to_ptr.vmem [resolvable:$true] %s387
          %390 = dma.vmem_to_hbm [thread:$0]  %s388, 128, %s385, %s374
        $region40: #{attributed_embedding.1} parent=35 // pred_fallthru
          _
      $region36: #{attributed_embedding.1} parent=5 // pred_fallthru
        _
      %p391 = scmp.le.s32.totalorder 2, %s13
      // Predicated region
      $region41: #{attributed_embedding.1} parent=5 // pred_check
        %p392 = pneg %p391
      $region42: #{attributed_embedding.1} parent=5 // pred_check_branch
        %394 = sbr.rel (%p392) target = $region44
      $region43: #{attributed_embedding.1} parent=5 // pred_region
        %s395 = ssub.s32 %s13, 2
        // Predicated region
        $region45: #{attributed_embedding.1} parent=43 // pred_check
          %p396 = pneg %p136
        $region46: #{attributed_embedding.1} parent=43 // pred_check_branch
          %398 = sbr.rel (%p396) target = $region48
        $region47: #{attributed_embedding.1} parent=43 // pred_region
          %s399 = sand.u32 %s121, 1
          %s400 = scalar_lea.sflag [#allocation3], %s399
          %s401 = sand.u32 %s121, 1
          %s402 = smul.addr %s401, 8
          %s403 = scalar_lea.vmem [#allocation2], %s402
          %404 = dma.done %s400, 128
        $region48: #{attributed_embedding.1} parent=43 // pred_fallthru
          _
      $region44: #{attributed_embedding.1} parent=5 // pred_fallthru
        _
    $region6: #{attributed_embedding.1} parent=1 // loop_footer
      %s17 = sadd.s32 1, %s13
    $region7: #{attributed_embedding.1} parent=1 // loop_footer_branch
      %12 = sbr.rel target = $region3
    $region8: #{attributed_embedding.1} parent=1 // loop_exit
      _
    %405 = vsyncpa [#allocation3], 1
    %s406 = scalar_lea.sflag [#allocation3], 1
    %407 = vsyncpa %s406, 1

</llo_original>
